<compile_context>
chip_gen: v7x
topology: tpu7x:2x2x1
jax: 0.10.0
libtpu: 0.0.40
codegen_flags: <defaults>
</compile_context>

<pallas_src>
import functools

import jax
import jax.numpy as jnp
from jax.experimental import pallas as pl
from jax.experimental.pallas import tpu as pltpu

_LANE = 128
_SUBLANE = 8


def _round_up(n, m):
    return ((n + m - 1) // m) * m


def ppo_kernel(x_ref, w1_ref, b1_ref, w2_ref, b2_ref, wh_ref, bh_ref,
               out_ref, *, action_dim):
    # Shared trunk: Linear -> Tanh -> Linear -> Tanh (f32 accumulation).
    h1 = jnp.tanh(
        jnp.dot(x_ref[...], w1_ref[...], preferred_element_type=jnp.float32)
        + b1_ref[...]
    )
    h2 = jnp.tanh(
        jnp.dot(h1.astype(w2_ref.dtype), w2_ref[...],
                preferred_element_type=jnp.float32)
        + b2_ref[...]
    )

    # Fused heads: one lane-dense matmul.  Columns [0, action_dim) are policy
    # logits, column `action_dim` is the value, remaining columns are padding.
    head = (
        jnp.dot(h2.astype(wh_ref.dtype), wh_ref[...],
                preferred_element_type=jnp.float32)
        + bh_ref[...]
    )

    col = jax.lax.broadcasted_iota(jnp.int32, head.shape, dimension=1)
    is_action = col < action_dim

    # Masked, max-subtracted softmax over the real action columns only.
    logits = jnp.where(is_action, head, -jnp.inf)
    m = jnp.max(logits, axis=-1, keepdims=True)
    e = jnp.where(is_action, jnp.exp(logits - m), 0.0)
    denom = jnp.sum(e, axis=-1, keepdims=True)
    probs = e * pl.reciprocal(denom, approx=False)

    # Action columns hold probabilities; value (and padding) columns keep the
    # raw linear head output.  Single unmasked lane-dense store.
    out_ref[...] = jnp.where(is_action, probs, head)


def prepare_params(params, *, compute_dtype=jnp.float32):
    """One-time padding + head fusion of the raw (pre-transposed) weights.

    params: dict with w1 [K,H], b1 [1,H], w2 [H,H], b2 [1,H],
            wp [H,A], bp [1,A], wv [H,1], bv [1,1].
    Returns (padded_arrays_dict, meta_dict).
    """
    input_dim, hidden_dim = params["w1"].shape
    action_dim = params["wp"].shape[1]

    k_pad = _round_up(input_dim, _LANE)
    h_pad = _round_up(hidden_dim, _LANE)
    n_pad = _round_up(action_dim + 1, _LANE)  # policy cols + value col

    f32 = jnp.float32
    w1 = jnp.zeros((k_pad, h_pad), f32).at[:input_dim, :hidden_dim].set(params["w1"])
    b1 = jnp.zeros((1, h_pad), f32).at[:, :hidden_dim].set(params["b1"])
    w2 = jnp.zeros((h_pad, h_pad), f32).at[:hidden_dim, :hidden_dim].set(params["w2"])
    b2 = jnp.zeros((1, h_pad), f32).at[:, :hidden_dim].set(params["b2"])

    # Fused head weights: policy columns, then the value column, then zeros.
    wh = (
        jnp.zeros((h_pad, n_pad), f32)
        .at[:hidden_dim, :action_dim].set(params["wp"])
        .at[:hidden_dim, action_dim:action_dim + 1].set(params["wv"])
    )
    bh = (
        jnp.zeros((1, n_pad), f32)
        .at[:, :action_dim].set(params["bp"])
        .at[:, action_dim:action_dim + 1].set(params["bv"])
    )

    arrays = {
        "w1": w1.astype(compute_dtype),
        "b1": b1,
        "w2": w2.astype(compute_dtype),
        "b2": b2,
        "wh": wh.astype(compute_dtype),
        "bh": bh,
    }
    meta = {
        "input_dim": input_dim,
        "action_dim": action_dim,
        "compute_dtype": compute_dtype,
    }
    return arrays, meta


@functools.partial(
    jax.jit,
    static_argnames=("input_dim", "action_dim", "block_b", "compute_dtype"),
)
def _ppo_forward_impl(x, w1, b1, w2, b2, wh, bh, *,
                      input_dim, action_dim, block_b, compute_dtype):
    B = x.shape[0]
    k_pad = w1.shape[0]
    h_pad = w1.shape[1]
    n_pad = wh.shape[1]

    tb = _round_up(max(block_b, _SUBLANE), _SUBLANE)  # batch tile (rows)
    b_pad = _round_up(B, tb)

    # Pad batch + feature dims of the activations (lane/sublane aligned).
    x_p = jnp.zeros((b_pad, k_pad), jnp.float32).at[:B, :input_dim].set(x)
    x_p = x_p.astype(compute_dtype)

    grid = (b_pad // tb,)

    out = pl.pallas_call(
        functools.partial(ppo_kernel, action_dim=action_dim),
        out_shape=jax.ShapeDtypeStruct((b_pad, n_pad), jnp.float32),
        grid=grid,
        in_specs=[
            pl.BlockSpec((tb, k_pad), lambda i: (i, 0)),     # x: walks batch
            pl.BlockSpec((k_pad, h_pad), lambda i: (0, 0)),  # w1: resident
            pl.BlockSpec((1, h_pad), lambda i: (0, 0)),      # b1: resident
            pl.BlockSpec((h_pad, h_pad), lambda i: (0, 0)),  # w2: resident
            pl.BlockSpec((1, h_pad), lambda i: (0, 0)),      # b2: resident
            pl.BlockSpec((h_pad, n_pad), lambda i: (0, 0)),  # fused head W
            pl.BlockSpec((1, n_pad), lambda i: (0, 0)),      # fused head b
        ],
        out_specs=pl.BlockSpec((tb, n_pad), lambda i: (i, 0)),
        compiler_params=pltpu.CompilerParams(
            dimension_semantics=("parallel",),
        ),
    )(x_p, w1, b1, w2, b2, wh, bh)

    probs = out[:B, :action_dim]
    value = out[:B, action_dim:action_dim + 1]
    return probs, value


def ppo_forward(x, prepared, *, block_b=128):
    """x: [B, input_dim] float32. prepared: output of prepare_params().

    Returns (action_probs [B, action_dim], value [B, 1]) in float32.
    """
    arrays, meta = prepared
    return _ppo_forward_impl(
        x, arrays["w1"], arrays["b1"], arrays["w2"], arrays["b2"],
        arrays["wh"], arrays["bh"],
        input_dim=meta["input_dim"],
        action_dim=meta["action_dim"],
        block_b=block_b,
        compute_dtype=meta["compute_dtype"],
    )


def init_params(key, input_dim, action_dim, hidden_dim):
    """Deterministic init mimicking PyTorch's Linear default (U[-1/sqrt(fan_in), ...])."""
    def linear(k, fan_in, fan_out):
        kw, kb = jax.random.split(k)
        bound = 1.0 / jnp.sqrt(fan_in)
        w = jax.random.uniform(kw, (fan_in, fan_out), jnp.float32, -bound, bound)
        b = jax.random.uniform(kb, (1, fan_out), jnp.float32, -bound, bound)
        return w, b

    k1, k2, k3, k4 = jax.random.split(key, 4)
    w1, b1 = linear(k1, input_dim, hidden_dim)
    w2, b2 = linear(k2, hidden_dim, hidden_dim)
    wp, bp = linear(k3, hidden_dim, action_dim)
    wv, bv = linear(k4, hidden_dim, 1)
    return {"w1": w1, "b1": b1, "w2": w2, "b2": b2,
            "wp": wp, "bp": bp, "wv": wv, "bv": bv}


def ppo_forward_ref(x, p):
    """Pure-JAX reference for correctness check."""
    h1 = jnp.tanh(x @ p["w1"] + p["b1"])
    h2 = jnp.tanh(h1 @ p["w2"] + p["b2"])
    logits = h2 @ p["wp"] + p["bp"]
    probs = jax.nn.softmax(logits, axis=-1)
    value = h2 @ p["wv"] + p["bv"]
    return probs, value


if __name__ == "__main__":
    input_dim, action_dim, hidden_dim = 8, 4, 64
    # Non-multiple of the 128-row batch tile: exercises batch padding and a
    # 2-step "parallel" grid.
    batch = 200

    key = jax.random.PRNGKey(0)
    k_params, k_x = jax.random.split(key)
    params = init_params(k_params, input_dim, action_dim, hidden_dim)
    x = jax.random.normal(k_x, (batch, input_dim), jnp.float32)

    prepared = prepare_params(params)          # one-time weight padding/fusion
    probs, value = ppo_forward(x, prepared)
    jax.block_until_ready((probs, value))

    probs_ref, value_ref = ppo_forward_ref(x, params)
    assert probs.shape == (batch, action_dim)
    assert value.shape == (batch, 1)
    assert jnp.allclose(probs, probs_ref, atol=1e-5, rtol=1e-5)
    assert jnp.allclose(value, value_ref, atol=1e-5, rtol=1e-5)
    # softmax rows sum to 1
    assert jnp.allclose(jnp.sum(probs, axis=-1), 1.0, atol=1e-5)

    print("KERNEL_OK")
</pallas_src>

<mosaic_0001>
module attributes {stable_mosaic.version = 11 : i64} {
  func.func @ppo_kernel(%arg0: i32, %arg1: memref<128x128xf32, #tpu.memory_space<vmem>>, %arg2: memref<128x128xf32, #tpu.memory_space<vmem>>, %arg3: memref<1x128xf32, #tpu.memory_space<vmem>>, %arg4: memref<128x128xf32, #tpu.memory_space<vmem>>, %arg5: memref<1x128xf32, #tpu.memory_space<vmem>>, %arg6: memref<128x128xf32, #tpu.memory_space<vmem>>, %arg7: memref<1x128xf32, #tpu.memory_space<vmem>>, %arg8: memref<128x128xf32, #tpu.memory_space<vmem>>) attributes {dimension_semantics = [#tpu.dimension_semantics<parallel>], iteration_bounds = array<i64: 2>, scalar_prefetch = 0 : i64, scratch_operands = 0 : i64, tpu.core_type = #tpu.core_type<tc>, window_params = [{transform_indices = @transform_0, window_bounds = array<i64: 128, 128>}, {pipeline_mode = #tpu.pipeline_mode<synchronous>, transform_indices = @transform_1, window_bounds = array<i64: 128, 128>}, {pipeline_mode = #tpu.pipeline_mode<synchronous>, transform_indices = @transform_2, window_bounds = array<i64: 1, 128>}, {pipeline_mode = #tpu.pipeline_mode<synchronous>, transform_indices = @transform_3, window_bounds = array<i64: 128, 128>}, {pipeline_mode = #tpu.pipeline_mode<synchronous>, transform_indices = @transform_4, window_bounds = array<i64: 1, 128>}, {pipeline_mode = #tpu.pipeline_mode<synchronous>, transform_indices = @transform_5, window_bounds = array<i64: 128, 128>}, {pipeline_mode = #tpu.pipeline_mode<synchronous>, transform_indices = @transform_6, window_bounds = array<i64: 1, 128>}, {transform_indices = @transform_7, window_bounds = array<i64: 128, 128>}]} {
    %c0 = arith.constant 0 : index
    %c0_0 = arith.constant 0 : index
    %0 = vector.load %arg1[%c0, %c0_0] : memref<128x128xf32, #tpu.memory_space<vmem>>, vector<128x128xf32>
    %c0_1 = arith.constant 0 : index
    %c0_2 = arith.constant 0 : index
    %1 = vector.load %arg2[%c0_1, %c0_2] : memref<128x128xf32, #tpu.memory_space<vmem>>, vector<128x128xf32>
    %cst = arith.constant dense<0.000000e+00> : vector<128x128xf32>
    %2 = tpu.matmul %0, %1, %cst {dimension_numbers = #tpu.dot_dimension_numbers<[1], [0], [0], [1], [0, 0, 1, 1], [], []>} : vector<128x128xf32>, vector<128x128xf32>, vector<128x128xf32> -> vector<128x128xf32>
    %c0_3 = arith.constant 0 : index
    %c0_4 = arith.constant 0 : index
    %3 = vector.load %arg3[%c0_3, %c0_4] : memref<1x128xf32, #tpu.memory_space<vmem>>, vector<1x128xf32>
    %4 = vector.broadcast %3 : vector<1x128xf32> to vector<128x128xf32>
    %5 = arith.addf %2, %4 : vector<128x128xf32>
    %6 = math.tanh %5 : vector<128x128xf32>
    %c0_5 = arith.constant 0 : index
    %c0_6 = arith.constant 0 : index
    %7 = vector.load %arg4[%c0_5, %c0_6] : memref<128x128xf32, #tpu.memory_space<vmem>>, vector<128x128xf32>
    %cst_7 = arith.constant dense<0.000000e+00> : vector<128x128xf32>
    %8 = tpu.matmul %6, %7, %cst_7 {dimension_numbers = #tpu.dot_dimension_numbers<[1], [0], [0], [1], [0, 0, 1, 1], [], []>} : vector<128x128xf32>, vector<128x128xf32>, vector<128x128xf32> -> vector<128x128xf32>
    %c0_8 = arith.constant 0 : index
    %c0_9 = arith.constant 0 : index
    %9 = vector.load %arg5[%c0_8, %c0_9] : memref<1x128xf32, #tpu.memory_space<vmem>>, vector<1x128xf32>
    %10 = vector.broadcast %9 : vector<1x128xf32> to vector<128x128xf32>
    %11 = arith.addf %8, %10 : vector<128x128xf32>
    %12 = math.tanh %11 : vector<128x128xf32>
    %c0_10 = arith.constant 0 : index
    %c0_11 = arith.constant 0 : index
    %13 = vector.load %arg6[%c0_10, %c0_11] : memref<128x128xf32, #tpu.memory_space<vmem>>, vector<128x128xf32>
    %cst_12 = arith.constant dense<0.000000e+00> : vector<128x128xf32>
    %14 = tpu.matmul %12, %13, %cst_12 {dimension_numbers = #tpu.dot_dimension_numbers<[1], [0], [0], [1], [0, 0, 1, 1], [], []>} : vector<128x128xf32>, vector<128x128xf32>, vector<128x128xf32> -> vector<128x128xf32>
    %c0_13 = arith.constant 0 : index
    %c0_14 = arith.constant 0 : index
    %15 = vector.load %arg7[%c0_13, %c0_14] : memref<1x128xf32, #tpu.memory_space<vmem>>, vector<1x128xf32>
    %16 = vector.broadcast %15 : vector<1x128xf32> to vector<128x128xf32>
    %17 = arith.addf %14, %16 : vector<128x128xf32>
    %18 = tpu.iota {dimensions = array<i32: 1>} : vector<128x128xi32>
    %c4_i32 = arith.constant 4 : i32
    %19 = vector.broadcast %c4_i32 : i32 to vector<128x128xi32>
    %20 = arith.cmpi slt, %18, %19 : vector<128x128xi32>
    %cst_15 = arith.constant 0xFF800000 : f32
    %21 = vector.broadcast %cst_15 : f32 to vector<128x128xf32>
    %22 = arith.select %20, %17, %21 : vector<128x128xi1>, vector<128x128xf32>
    %cst_16 = arith.constant dense<0xFF800000> : vector<128xf32>
    %23 = vector.multi_reduction <maximumf>, %22, %cst_16 [1] : vector<128x128xf32> to vector<128xf32>
    %24 = vector.shape_cast %23 : vector<128xf32> to vector<128x1xf32>
    %25 = vector.broadcast %24 : vector<128x1xf32> to vector<128x128xf32>
    %26 = arith.subf %22, %25 : vector<128x128xf32>
    %27 = math.exp %26 : vector<128x128xf32>
    %cst_17 = arith.constant 0.000000e+00 : f32
    %28 = vector.broadcast %cst_17 : f32 to vector<128x128xf32>
    %29 = arith.select %20, %27, %28 : vector<128x128xi1>, vector<128x128xf32>
    %cst_18 = arith.constant dense<0.000000e+00> : vector<128xf32>
    %30 = vector.multi_reduction <add>, %29, %cst_18 [1] : vector<128x128xf32> to vector<128xf32>
    %31 = vector.shape_cast %30 : vector<128xf32> to vector<128x1xf32>
    %32 = tpu.reciprocal %31 : vector<128x1xf32> -> vector<128x1xf32>
    %33 = vector.broadcast %32 : vector<128x1xf32> to vector<128x128xf32>
    %34 = arith.mulf %29, %33 : vector<128x128xf32>
    %35 = arith.select %20, %34, %17 : vector<128x128xi1>, vector<128x128xf32>
    %c0_19 = arith.constant 0 : index
    %c0_20 = arith.constant 0 : index
    %36 = vector.load %arg8[%c0_19, %c0_20] : memref<128x128xf32, #tpu.memory_space<vmem>>, vector<128x128xf32>
    tpu.vector_store %arg8[%c0_19, %c0_20], %35 {strides = array<i32>} : memref<128x128xf32, #tpu.memory_space<vmem>>, vector<128x128xf32>,
    return
  }
  func.func @transform_0(%arg0: i32) -> (i32, i32) {
    %c0_i32 = arith.constant 0 : i32
    %c0_i32_0 = arith.constant 0 : i32
    return %arg0, %c0_i32 : i32, i32
  }
  func.func @transform_1(%arg0: i32) -> (i32, i32) {
    %c0_i32 = arith.constant 0 : i32
    %c0_i32_0 = arith.constant 0 : i32
    %c0_i32_1 = arith.constant 0 : i32
    return %c0_i32, %c0_i32_0 : i32, i32
  }
  func.func @transform_2(%arg0: i32) -> (i32, i32) {
    %c0_i32 = arith.constant 0 : i32
    %c0_i32_0 = arith.constant 0 : i32
    %c0_i32_1 = arith.constant 0 : i32
    return %c0_i32, %c0_i32_0 : i32, i32
  }
  func.func @transform_3(%arg0: i32) -> (i32, i32) {
    %c0_i32 = arith.constant 0 : i32
    %c0_i32_0 = arith.constant 0 : i32
    %c0_i32_1 = arith.constant 0 : i32
    return %c0_i32, %c0_i32_0 : i32, i32
  }
  func.func @transform_4(%arg0: i32) -> (i32, i32) {
    %c0_i32 = arith.constant 0 : i32
    %c0_i32_0 = arith.constant 0 : i32
    %c0_i32_1 = arith.constant 0 : i32
    return %c0_i32, %c0_i32_0 : i32, i32
  }
  func.func @transform_5(%arg0: i32) -> (i32, i32) {
    %c0_i32 = arith.constant 0 : i32
    %c0_i32_0 = arith.constant 0 : i32
    %c0_i32_1 = arith.constant 0 : i32
    return %c0_i32, %c0_i32_0 : i32, i32
  }
  func.func @transform_6(%arg0: i32) -> (i32, i32) {
    %c0_i32 = arith.constant 0 : i32
    %c0_i32_0 = arith.constant 0 : i32
    %c0_i32_1 = arith.constant 0 : i32
    return %c0_i32, %c0_i32_0 : i32, i32
  }
  func.func @transform_7(%arg0: i32) -> (i32, i32) {
    %c0_i32 = arith.constant 0 : i32
    %c0_i32_0 = arith.constant 0 : i32
    return %arg0, %c0_i32 : i32, i32
  }
}

</mosaic_0001>

<llo_original>
// kernel: _ppo_forward_impl.1
$region0: #{_ppo_forward_impl.1}
  #allocation0 [shape = 'u32[]', space=smem, size = 0x4, offset = 0x4, fixed_abs, tag = 'smem constant byte address 0x4 - core index']
  #allocation1 [shape = 'u32[144,128]{1,0:T(1,128)}', space=vmem, size = 0x12000, scoped, tag = 'internal scratch']
  %s0 = inlined_call_operand.vmem [shape: f32[256,128], index: 0, kind: input, shape index: {}]
  %s1 = inlined_call_operand.vmem [shape: f32[128,128], index: 1, kind: input, shape index: {}]
  %s2 = inlined_call_operand.vmem [shape: f32[1,128], index: 2, kind: input, shape index: {}]
  %s3 = inlined_call_operand.vmem [shape: f32[128,128], index: 3, kind: input, shape index: {}]
  %s4 = inlined_call_operand.vmem [shape: f32[1,128], index: 4, kind: input, shape index: {}]
  %s5 = inlined_call_operand.vmem [shape: f32[128,128], index: 5, kind: input, shape index: {}]
  %s6 = inlined_call_operand.vmem [shape: f32[1,128], index: 6, kind: input, shape index: {}]
  %s7 = inlined_call_operand.vmem [shape: f32[256,128], index: 7, kind: output, shape index: {}]
  %s8 = sld [smem:[#allocation0]]
  $region61: #{_ppo_forward_impl.1} parent=0
    _
  %s10 = ssub.s32 1, %s8
  %s11 = scalar_select 0, %s10, %s8
  loop: start=0, step=1, limit=4
  $region2: #{_ppo_forward_impl.1} parent=0 // loop_pre_header
    _
  $region3: #{_ppo_forward_impl.1} parent=0 // loop_header
    %s13 = sphi 0, %s17
    %p14 = scmp.ge.s32.totalorder %s13, 4
    %s23 = sphi 0, %s25
    %s26 = sphi 0, %s23
    %s27 = sphi 0, %s26
    %s43 = sphi 0, %s27
    %s47 = sphi 0, %s47
    %s49 = sphi 0, %s47
    %s50 = sphi 0, %s49
    %s64 = sphi 0, %s50
    %s68 = sphi 0, %s68
    %s70 = sphi 0, %s68
    %s71 = sphi 0, %s70
    %s85 = sphi 0, %s71
    %s89 = sphi 0, %s89
    %s91 = sphi 0, %s89
    %s92 = sphi 0, %s91
    %s106 = sphi 0, %s92
    %s110 = sphi 0, %s110
    %s112 = sphi 0, %s110
    %s113 = sphi 0, %s112
    %s127 = sphi 0, %s113
    %s131 = sphi 0, %s131
    %s133 = sphi 0, %s131
    %s134 = sphi 0, %s133
    %s148 = sphi 0, %s134
    %s152 = sphi 0, %s152
    %s154 = sphi 0, %s152
    %s155 = sphi 0, %s154
    %s169 = sphi 0, %s155
    %s175 = sphi 0, %s177
    %s178 = sphi 0, %s175
    %s179 = sphi 0, %s178
    %s195 = sphi 0, %s179
  $region4: #{_ppo_forward_impl.1} parent=0 // loop_header_branch
    %16 = sbr.rel (%p14) target = $region8
  $region5: #{_ppo_forward_impl.1} parent=0 // loop_body
    %s18 = ssub.s32 %s13, 1
    %s19 = ssub.s32 %s13, 2
    %s20 = sadd.s32 %s13, 1
    %s21 = ssub.s32 %s13, %s20
    %p22 = scmp.eq.s32.totalorder %s21, 0
    %s24 = sadd.s32 %s23, 1
    %s25 = scalar_select %p22, %s23, %s24
    %p28 = pneg %p22
    %p29 = scmp.eq.s32.totalorder %s13, 1
    %p30 = por %p28, %p29
    %p31 = scmp.ne.s32.totalorder %s23, %s26
    %p32 = scmp.eq.s32.totalorder %s13, 0
    %p33 = por %p31, %p32
    %p34 = scmp.ne.s32.totalorder %s23, %s26
    %p35 = scmp.eq.s32.totalorder %s18, 1
    %p36 = por %p34, %p35
    %p37 = scmp.ne.s32.totalorder %s26, %s27
    %p38 = scmp.eq.s32.totalorder %s18, 0
    %p39 = por %p37, %p38
    %p40 = scmp.ne.s32.totalorder %s26, %s27
    %p41 = scmp.eq.s32.totalorder %s19, 1
    %p42 = por %p40, %p41
    %p44 = scmp.ne.s32.totalorder %s27, %s43
    %p45 = scmp.eq.s32.totalorder %s19, 0
    %p46 = por %p44, %p45
    %s48 = sadd.s32 %s47, 1
    %p51 = scmp.eq.s32.totalorder %s13, 1
    %p52 = scmp.ne.s32.totalorder %s47, %s49
    %p53 = scmp.eq.s32.totalorder %s13, 0
    %p54 = por %p52, %p53
    %p55 = scmp.ne.s32.totalorder %s47, %s49
    %p56 = scmp.eq.s32.totalorder %s18, 1
    %p57 = por %p55, %p56
    %p58 = scmp.ne.s32.totalorder %s49, %s50
    %p59 = scmp.eq.s32.totalorder %s18, 0
    %p60 = por %p58, %p59
    %p61 = scmp.ne.s32.totalorder %s49, %s50
    %p62 = scmp.eq.s32.totalorder %s19, 1
    %p63 = por %p61, %p62
    %p65 = scmp.ne.s32.totalorder %s50, %s64
    %p66 = scmp.eq.s32.totalorder %s19, 0
    %p67 = por %p65, %p66
    %s69 = sadd.s32 %s68, 1
    %p72 = scmp.eq.s32.totalorder %s13, 1
    %p73 = scmp.ne.s32.totalorder %s68, %s70
    %p74 = scmp.eq.s32.totalorder %s13, 0
    %p75 = por %p73, %p74
    %p76 = scmp.ne.s32.totalorder %s68, %s70
    %p77 = scmp.eq.s32.totalorder %s18, 1
    %p78 = por %p76, %p77
    %p79 = scmp.ne.s32.totalorder %s70, %s71
    %p80 = scmp.eq.s32.totalorder %s18, 0
    %p81 = por %p79, %p80
    %p82 = scmp.ne.s32.totalorder %s70, %s71
    %p83 = scmp.eq.s32.totalorder %s19, 1
    %p84 = por %p82, %p83
    %p86 = scmp.ne.s32.totalorder %s71, %s85
    %p87 = scmp.eq.s32.totalorder %s19, 0
    %p88 = por %p86, %p87
    %s90 = sadd.s32 %s89, 1
    %p93 = scmp.eq.s32.totalorder %s13, 1
    %p94 = scmp.ne.s32.totalorder %s89, %s91
    %p95 = scmp.eq.s32.totalorder %s13, 0
    %p96 = por %p94, %p95
    %p97 = scmp.ne.s32.totalorder %s89, %s91
    %p98 = scmp.eq.s32.totalorder %s18, 1
    %p99 = por %p97, %p98
    %p100 = scmp.ne.s32.totalorder %s91, %s92
    %p101 = scmp.eq.s32.totalorder %s18, 0
    %p102 = por %p100, %p101
    %p103 = scmp.ne.s32.totalorder %s91, %s92
    %p104 = scmp.eq.s32.totalorder %s19, 1
    %p105 = por %p103, %p104
    %p107 = scmp.ne.s32.totalorder %s92, %s106
    %p108 = scmp.eq.s32.totalorder %s19, 0
    %p109 = por %p107, %p108
    %s111 = sadd.s32 %s110, 1
    %p114 = scmp.eq.s32.totalorder %s13, 1
    %p115 = scmp.ne.s32.totalorder %s110, %s112
    %p116 = scmp.eq.s32.totalorder %s13, 0
    %p117 = por %p115, %p116
    %p118 = scmp.ne.s32.totalorder %s110, %s112
    %p119 = scmp.eq.s32.totalorder %s18, 1
    %p120 = por %p118, %p119
    %p121 = scmp.ne.s32.totalorder %s112, %s113
    %p122 = scmp.eq.s32.totalorder %s18, 0
    %p123 = por %p121, %p122
    %p124 = scmp.ne.s32.totalorder %s112, %s113
    %p125 = scmp.eq.s32.totalorder %s19, 1
    %p126 = por %p124, %p125
    %p128 = scmp.ne.s32.totalorder %s113, %s127
    %p129 = scmp.eq.s32.totalorder %s19, 0
    %p130 = por %p128, %p129
    %s132 = sadd.s32 %s131, 1
    %p135 = scmp.eq.s32.totalorder %s13, 1
    %p136 = scmp.ne.s32.totalorder %s131, %s133
    %p137 = scmp.eq.s32.totalorder %s13, 0
    %p138 = por %p136, %p137
    %p139 = scmp.ne.s32.totalorder %s131, %s133
    %p140 = scmp.eq.s32.totalorder %s18, 1
    %p141 = por %p139, %p140
    %p142 = scmp.ne.s32.totalorder %s133, %s134
    %p143 = scmp.eq.s32.totalorder %s18, 0
    %p144 = por %p142, %p143
    %p145 = scmp.ne.s32.totalorder %s133, %s134
    %p146 = scmp.eq.s32.totalorder %s19, 1
    %p147 = por %p145, %p146
    %p149 = scmp.ne.s32.totalorder %s134, %s148
    %p150 = scmp.eq.s32.totalorder %s19, 0
    %p151 = por %p149, %p150
    %s153 = sadd.s32 %s152, 1
    %p156 = scmp.eq.s32.totalorder %s13, 1
    %p157 = scmp.ne.s32.totalorder %s152, %s154
    %p158 = scmp.eq.s32.totalorder %s13, 0
    %p159 = por %p157, %p158
    %p160 = scmp.ne.s32.totalorder %s152, %s154
    %p161 = scmp.eq.s32.totalorder %s18, 1
    %p162 = por %p160, %p161
    %p163 = scmp.ne.s32.totalorder %s154, %s155
    %p164 = scmp.eq.s32.totalorder %s18, 0
    %p165 = por %p163, %p164
    %p166 = scmp.ne.s32.totalorder %s154, %s155
    %p167 = scmp.eq.s32.totalorder %s19, 1
    %p168 = por %p166, %p167
    %p170 = scmp.ne.s32.totalorder %s155, %s169
    %p171 = scmp.eq.s32.totalorder %s19, 0
    %p172 = por %p170, %p171
    %s173 = ssub.s32 %s13, %s20
    %p174 = scmp.eq.s32.totalorder %s173, 0
    %s176 = sadd.s32 %s175, 1
    %s177 = scalar_select %p174, %s175, %s176
    %p180 = pneg %p174
    %p181 = scmp.eq.s32.totalorder %s13, 1
    %p182 = por %p180, %p181
    %p183 = scmp.ne.s32.totalorder %s175, %s178
    %p184 = scmp.eq.s32.totalorder %s13, 0
    %p185 = por %p183, %p184
    %p186 = scmp.ne.s32.totalorder %s175, %s178
    %p187 = scmp.eq.s32.totalorder %s18, 1
    %p188 = por %p186, %p187
    %p189 = scmp.ne.s32.totalorder %s178, %s179
    %p190 = scmp.eq.s32.totalorder %s18, 0
    %p191 = por %p189, %p190
    %p192 = scmp.ne.s32.totalorder %s178, %s179
    %p193 = scmp.eq.s32.totalorder %s19, 1
    %p194 = por %p192, %p193
    %p196 = scmp.ne.s32.totalorder %s179, %s195
    %p197 = scmp.eq.s32.totalorder %s19, 0
    %p198 = por %p196, %p197
    %p199 = scmp.le.s32.totalorder 1, %s13
    %p200 = scmp.lt.s32.totalorder %s13, 3
    %p201 = pnand %p199, %p200
    %p202 = pneg %p201
    // Predicated region
    $region9: #{_ppo_forward_impl.1} parent=5 // pred_check
      _
    $region10: #{_ppo_forward_impl.1} parent=5 // pred_check_branch
      %204 = sbr.rel (%p201) target = $region12
    $region11: #{_ppo_forward_impl.1} parent=5 // pred_region
      %s205 = ssub.s32 %s13, 1
      // Predicated region
      $region13: #{_ppo_forward_impl.1} parent=11 // pred_check
        %p206 = pneg %p60
      $region14: #{_ppo_forward_impl.1} parent=11 // pred_check_branch
        %208 = sbr.rel (%p206) target = $region16
      $region15: #{_ppo_forward_impl.1} parent=11 // pred_region
        _
      $region16: #{_ppo_forward_impl.1} parent=11 // pred_fallthru
        _
      // Predicated region
      $region17: #{_ppo_forward_impl.1} parent=11 // pred_check
        %p209 = pneg %p81
      $region18: #{_ppo_forward_impl.1} parent=11 // pred_check_branch
        %211 = sbr.rel (%p209) target = $region20
      $region19: #{_ppo_forward_impl.1} parent=11 // pred_region
        _
      $region20: #{_ppo_forward_impl.1} parent=11 // pred_fallthru
        _
      // Predicated region
      $region21: #{_ppo_forward_impl.1} parent=11 // pred_check
        %p212 = pneg %p102
      $region22: #{_ppo_forward_impl.1} parent=11 // pred_check_branch
        %214 = sbr.rel (%p212) target = $region24
      $region23: #{_ppo_forward_impl.1} parent=11 // pred_region
        _
      $region24: #{_ppo_forward_impl.1} parent=11 // pred_fallthru
        _
      // Predicated region
      $region25: #{_ppo_forward_impl.1} parent=11 // pred_check
        %p215 = pneg %p123
      $region26: #{_ppo_forward_impl.1} parent=11 // pred_check_branch
        %217 = sbr.rel (%p215) target = $region28
      $region27: #{_ppo_forward_impl.1} parent=11 // pred_region
        _
      $region28: #{_ppo_forward_impl.1} parent=11 // pred_fallthru
        _
      // Predicated region
      $region29: #{_ppo_forward_impl.1} parent=11 // pred_check
        %p218 = pneg %p144
      $region30: #{_ppo_forward_impl.1} parent=11 // pred_check_branch
        %220 = sbr.rel (%p218) target = $region32
      $region31: #{_ppo_forward_impl.1} parent=11 // pred_region
        _
      $region32: #{_ppo_forward_impl.1} parent=11 // pred_fallthru
        _
      // Predicated region
      $region33: #{_ppo_forward_impl.1} parent=11 // pred_check
        %p221 = pneg %p165
      $region34: #{_ppo_forward_impl.1} parent=11 // pred_check_branch
        %223 = sbr.rel (%p221) target = $region36
      $region35: #{_ppo_forward_impl.1} parent=11 // pred_region
        _
      $region36: #{_ppo_forward_impl.1} parent=11 // pred_fallthru
        _
    $region12: #{_ppo_forward_impl.1} parent=5 // pred_fallthru
      _
    %p224 = scmp.lt.s32.totalorder %s13, 2
    // Predicated region
    $region37: #{_ppo_forward_impl.1} parent=5 // pred_check
      %p225 = pneg %p224
    $region38: #{_ppo_forward_impl.1} parent=5 // pred_check_branch
      %227 = sbr.rel (%p225) target = $region40
    $region39: #{_ppo_forward_impl.1} parent=5 // pred_region
      // Predicated region
      $region41: #{_ppo_forward_impl.1} parent=39 // pred_check
        %p228 = pneg %p33
      $region42: #{_ppo_forward_impl.1} parent=39 // pred_check_branch
        %230 = sbr.rel (%p228) target = $region44
      $region43: #{_ppo_forward_impl.1} parent=39 // pred_region
        %s231 = smul.u32 16, %s13
        %p232 = scmp.lt.s32.totalorder %s231, 31
        %s233 = scalar_select %p232, %s231, 31
        %s234 = smul.addr %s233, 8
        %s235 = scalar_lea.vmem %s0, %s234
        %s236 = smul.u32 16, %s13
      $region44: #{_ppo_forward_impl.1} parent=39 // pred_fallthru
        _
    $region40: #{_ppo_forward_impl.1} parent=5 // pred_fallthru
      _
    %p237 = scmp.le.s32.totalorder 1, %s13
    %p238 = scmp.lt.s32.totalorder %s13, 3
    %p239 = pnand %p237, %p238
    %p240 = pneg %p239
    // Predicated region
    $region45: #{_ppo_forward_impl.1} parent=5 // pred_check
      _
    $region46: #{_ppo_forward_impl.1} parent=5 // pred_check_branch
      %242 = sbr.rel (%p239) target = $region48
    $region47: #{_ppo_forward_impl.1} parent=5 // pred_region
      %s243 = ssub.s32 %s13, 1
      %s244 = smul.u32 16, %s18
      %p245 = scmp.lt.s32.totalorder %s244, 31
      %s246 = scalar_select %p245, %s244, 31
      %s247 = smul.addr %s246, 8
      %s248 = scalar_lea.vmem %s0, %s247
      %p249 = pneg %p39
      %p250 = pneg %p36
      %p251 = pneg %p60
      %p252 = pneg %p57
      %p253 = pneg %p81
      %p254 = pneg %p78
      %p255 = pneg %p102
      %p256 = pneg %p99
      %p257 = pneg %p123
      %p258 = pneg %p120
      %p259 = pneg %p144
      %p260 = pneg %p141
      %p261 = pneg %p165
      %p262 = pneg %p162
      %p263 = pneg %p191
      %p264 = pneg %p188
      %s265 = smul.u32 16, %s18
      %p266 = scmp.lt.s32.totalorder %s265, 31
      %s267 = scalar_select %p266, %s265, 31
      %s268 = smul.addr %s267, 8
      %s269 = scalar_lea.vmem %s7, %s268
      %s270 = smul.u32 16, %s18
      %p271 = scmp.lt.s32.totalorder %s270, 31
      %s272 = scalar_select %p271, %s270, 31
      %s273 = smul.addr %s272, 8
      %s274 = scalar_lea.vmem %s0, %s273
      %s275 = smul.u32 16, %s18
      %s276 = smul.u32 16, %s18
      %p277 = scmp.lt.s32.totalorder %s276, 31
      %s278 = scalar_select %p277, %s276, 31
      %s279 = smul.addr %s278, 8
      %s280 = scalar_lea.vmem %s7, %s279
      %s281 = smul.u32 16, %s18
      %v282 = vld [vmem:[%s274] sm:$0xff]
      %v283 = vld [vmem:[%s274 + $0x8] sm:$0xff]
      %v284 = vld [vmem:[%s274 + $0x10] sm:$0xff]
      %v285 = vld [vmem:[%s274 + $0x18] sm:$0xff]
      %v286 = vld [vmem:[%s274 + $0x20] sm:$0xff]
      %v287 = vld [vmem:[%s274 + $0x28] sm:$0xff]
      %v288 = vld [vmem:[%s274 + $0x30] sm:$0xff]
      %v289 = vld [vmem:[%s274 + $0x38] sm:$0xff]
      %v290 = vld [vmem:[%s274 + $0x40] sm:$0xff]
      %v291 = vld [vmem:[%s274 + $0x48] sm:$0xff]
      %v292 = vld [vmem:[%s274 + $0x50] sm:$0xff]
      %v293 = vld [vmem:[%s274 + $0x58] sm:$0xff]
      %v294 = vld [vmem:[%s274 + $0x60] sm:$0xff]
      %v295 = vld [vmem:[%s274 + $0x68] sm:$0xff]
      %v296 = vld [vmem:[%s274 + $0x70] sm:$0xff]
      %v297 = vld [vmem:[%s274 + $0x78] sm:$0xff]
      %v298 = vld [vmem:[%s1] sm:$0xff]
      %v299 = vld [vmem:[%s1 + $0x8] sm:$0xff]
      %v300 = vld [vmem:[%s1 + $0x10] sm:$0xff]
      %v301 = vld [vmem:[%s1 + $0x18] sm:$0xff]
      %v302 = vld [vmem:[%s1 + $0x20] sm:$0xff]
      %v303 = vld [vmem:[%s1 + $0x28] sm:$0xff]
      %v304 = vld [vmem:[%s1 + $0x30] sm:$0xff]
      %v305 = vld [vmem:[%s1 + $0x38] sm:$0xff]
      %v306 = vld [vmem:[%s1 + $0x40] sm:$0xff]
      %v307 = vld [vmem:[%s1 + $0x48] sm:$0xff]
      %v308 = vld [vmem:[%s1 + $0x50] sm:$0xff]
      %v309 = vld [vmem:[%s1 + $0x58] sm:$0xff]
      %v310 = vld [vmem:[%s1 + $0x60] sm:$0xff]
      %v311 = vld [vmem:[%s1 + $0x68] sm:$0xff]
      %v312 = vld [vmem:[%s1 + $0x70] sm:$0xff]
      %v313 = vld [vmem:[%s1 + $0x78] sm:$0xff]
      %v314 = vld [vmem:[%s2] sm:$0x1]
      %v316 = vlaneseq
      %v317 = vshrl.u32 %v316, 7
      %v318 = vsub.s32 0, %v317
      %v319 = vrot.slane %v314, %v318
      %321 = vmatprep.subr.mxu0 0.0
      %322 = vmatpush1.msra.mxu0 %v298
      %323 = vmatprep.subr.mxu0 0.0
      %324 = vmatpush1.msra.mxu0 %v299
      %325 = vmatprep.subr.mxu0 0.0
      %326 = vmatpush1.msra.mxu0 %v300
      %327 = vmatprep.subr.mxu0 0.0
      %328 = vmatpush1.msra.mxu0 %v301
      %329 = vmatprep.subr.mxu0 0.0
      %330 = vmatpush1.msra.mxu0 %v302
      %331 = vmatprep.subr.mxu0 0.0
      %332 = vmatpush1.msra.mxu0 %v303
      %333 = vmatprep.subr.mxu0 0.0
      %334 = vmatpush1.msra.mxu0 %v304
      %335 = vmatprep.subr.mxu0 0.0
      %336 = vmatpush1.msra.mxu0 %v305
      %337 = vmatprep.subr.mxu0 0.0
      %338 = vmatpush1.msra.mxu0 %v306
      %339 = vmatprep.subr.mxu0 0.0
      %340 = vmatpush1.msra.mxu0 %v307
      %341 = vmatprep.subr.mxu0 0.0
      %342 = vmatpush1.msra.mxu0 %v308
      %343 = vmatprep.subr.mxu0 0.0
      %344 = vmatpush1.msra.mxu0 %v309
      %345 = vmatprep.subr.mxu0 0.0
      %346 = vmatpush1.msra.mxu0 %v310
      %347 = vmatprep.subr.mxu0 0.0
      %348 = vmatpush1.msra.mxu0 %v311
      %349 = vmatprep.subr.mxu0 0.0
      %350 = vmatpush1.msra.mxu0 %v312
      %351 = vmatprep.subr.mxu0 0.0
      %352 = vmatpush1.msra.mxu0 %v313
      %353 = vmatprep.subr.mxu0 0.0
      %354 = vmatpush1.msra.mxu0 0.0
      %355 = vmatprep.subr.mxu0 0.0
      %356 = vmatpush1.msra.mxu0 0.0
      %357 = vmatprep.subr.mxu0 0.0
      %358 = vmatpush1.msra.mxu0 0.0
      %359 = vmatprep.subr.mxu0 0.0
      %360 = vmatpush1.msra.mxu0 0.0
      %361 = vmatprep.subr.mxu0 0.0
      %362 = vmatpush1.msra.mxu0 0.0
      %363 = vmatprep.subr.mxu0 0.0
      %364 = vmatpush1.msra.mxu0 0.0
      %365 = vmatprep.subr.mxu0 0.0
      %366 = vmatpush1.msra.mxu0 0.0
      %367 = vmatprep.subr.mxu0 0.0
      %368 = vmatpush1.msra.mxu0 0.0
      %369 = vmatprep.subr.mxu0 0.0
      %370 = vmatpush1.msra.mxu0 0.0
      %371 = vmatprep.subr.mxu0 0.0
      %372 = vmatpush1.msra.mxu0 0.0
      %373 = vmatprep.subr.mxu0 0.0
      %374 = vmatpush1.msra.mxu0 0.0
      %375 = vmatprep.subr.mxu0 0.0
      %376 = vmatpush1.msra.mxu0 0.0
      %377 = vmatprep.subr.mxu0 0.0
      %378 = vmatpush1.msra.mxu0 0.0
      %379 = vmatprep.subr.mxu0 0.0
      %380 = vmatpush1.msra.mxu0 0.0
      %381 = vmatprep.subr.mxu0 0.0
      %382 = vmatpush1.msra.mxu0 0.0
      %383 = vmatprep.subr.mxu0 0.0
      %384 = vmatpush1.msra.mxu0 0.0
      %385 = vmatprep.mubr.f32.mxu0 0.0
      %386 = vmatmul.mubr.f32.gmra.mrb[0].mxu0 %v282
      %v387 = vpop.f32.mrb[0].mxu0
      %v388 = vadd.f32 %v319, %v387
      %v389 = vpop.f32.mrb[0].mxu0
      %390 = vmatprep.mubr.f32.mxu0 0.0
      %391 = vmatmul.mubr.f32.gmra.mrb[0].mxu0 %v283
      %v392 = vpop.f32.mrb[0].mxu0
      %v393 = vadd.f32 %v319, %v392
      %v394 = vpop.f32.mrb[0].mxu0
      %395 = vmatprep.mubr.f32.mxu0 0.0
      %396 = vmatmul.mubr.f32.gmra.mrb[0].mxu0 %v284
      %v397 = vpop.f32.mrb[0].mxu0
      %v398 = vadd.f32 %v319, %v397
      %v399 = vpop.f32.mrb[0].mxu0
      %400 = vmatprep.mubr.f32.mxu0 0.0
      %401 = vmatmul.mubr.f32.gmra.mrb[0].mxu0 %v285
      %v402 = vpop.f32.mrb[0].mxu0
      %v403 = vadd.f32 %v319, %v402
      %v404 = vpop.f32.mrb[0].mxu0
      %405 = vmatprep.mubr.f32.mxu0 0.0
      %406 = vmatmul.mubr.f32.gmra.mrb[0].mxu0 %v286
      %v407 = vpop.f32.mrb[0].mxu0
      %v408 = vadd.f32 %v319, %v407
      %v409 = vpop.f32.mrb[0].mxu0
      %410 = vmatprep.mubr.f32.mxu0 0.0
      %411 = vmatmul.mubr.f32.gmra.mrb[0].mxu0 %v287
      %v412 = vpop.f32.mrb[0].mxu0
      %v413 = vadd.f32 %v319, %v412
      %v414 = vpop.f32.mrb[0].mxu0
      %415 = vmatprep.mubr.f32.mxu0 0.0
      %416 = vmatmul.mubr.f32.gmra.mrb[0].mxu0 %v288
      %v417 = vpop.f32.mrb[0].mxu0
      %v418 = vadd.f32 %v319, %v417
      %v419 = vpop.f32.mrb[0].mxu0
      %420 = vmatprep.mubr.f32.mxu0 0.0
      %421 = vmatmul.mubr.f32.gmra.mrb[0].mxu0 %v289
      %v422 = vpop.f32.mrb[0].mxu0
      %v423 = vadd.f32 %v319, %v422
      %v424 = vpop.f32.mrb[0].mxu0
      %425 = vmatprep.mubr.f32.mxu0 0.0
      %426 = vmatmul.mubr.f32.gmra.mrb[0].mxu0 %v290
      %v427 = vpop.f32.mrb[0].mxu0
      %v428 = vadd.f32 %v319, %v427
      %v429 = vpop.f32.mrb[0].mxu0
      %430 = vmatprep.mubr.f32.mxu0 0.0
      %431 = vmatmul.mubr.f32.gmra.mrb[0].mxu0 %v291
      %v432 = vpop.f32.mrb[0].mxu0
      %v433 = vadd.f32 %v319, %v432
      %v434 = vpop.f32.mrb[0].mxu0
      %435 = vmatprep.mubr.f32.mxu0 0.0
      %436 = vmatmul.mubr.f32.gmra.mrb[0].mxu0 %v292
      %v437 = vpop.f32.mrb[0].mxu0
      %v438 = vadd.f32 %v319, %v437
      %v439 = vpop.f32.mrb[0].mxu0
      %440 = vmatprep.mubr.f32.mxu0 0.0
      %441 = vmatmul.mubr.f32.gmra.mrb[0].mxu0 %v293
      %v442 = vpop.f32.mrb[0].mxu0
      %v443 = vadd.f32 %v319, %v442
      %v444 = vpop.f32.mrb[0].mxu0
      %445 = vmatprep.mubr.f32.mxu0 0.0
      %446 = vmatmul.mubr.f32.gmra.mrb[0].mxu0 %v294
      %v447 = vpop.f32.mrb[0].mxu0
      %v448 = vadd.f32 %v319, %v447
      %v449 = vpop.f32.mrb[0].mxu0
      %450 = vmatprep.mubr.f32.mxu0 0.0
      %451 = vmatmul.mubr.f32.gmra.mrb[0].mxu0 %v295
      %v452 = vpop.f32.mrb[0].mxu0
      %v453 = vadd.f32 %v319, %v452
      %v454 = vpop.f32.mrb[0].mxu0
      %455 = vmatprep.mubr.f32.mxu0 0.0
      %456 = vmatmul.mubr.f32.gmra.mrb[0].mxu0 %v296
      %v457 = vpop.f32.mrb[0].mxu0
      %v458 = vadd.f32 %v319, %v457
      %v459 = vpop.f32.mrb[0].mxu0
      %460 = vmatprep.mubr.f32.mxu0 0.0
      %461 = vmatmul.mubr.f32.gmra.mrb[0].mxu0 %v297
      %v462 = vpop.f32.mrb[0].mxu0
      %v463 = vadd.f32 %v319, %v462
      %v464 = vpop.f32.mrb[0].mxu0
      %465 = vdwg.mxu0
      %v466 = vtanh.pop %v388
      %v467 = vtanh.pop %v393
      %v468 = vtanh.pop %v398
      %v469 = vtanh.pop %v403
      %v470 = vtanh.pop %v408
      %v471 = vtanh.pop %v413
      %v472 = vtanh.pop %v418
      %v473 = vtanh.pop %v423
      %v474 = vtanh.pop %v428
      %v475 = vtanh.pop %v433
      %v476 = vtanh.pop %v438
      %v477 = vtanh.pop %v443
      %v478 = vtanh.pop %v448
      %v479 = vtanh.pop %v453
      %v480 = vtanh.pop %v458
      %v481 = vtanh.pop %v463
      %v482 = vld [vmem:[%s3] sm:$0xff]
      %v483 = vld [vmem:[%s3 + $0x8] sm:$0xff]
      %v484 = vld [vmem:[%s3 + $0x10] sm:$0xff]
      %v485 = vld [vmem:[%s3 + $0x18] sm:$0xff]
      %v486 = vld [vmem:[%s3 + $0x20] sm:$0xff]
      %v487 = vld [vmem:[%s3 + $0x28] sm:$0xff]
      %v488 = vld [vmem:[%s3 + $0x30] sm:$0xff]
      %v489 = vld [vmem:[%s3 + $0x38] sm:$0xff]
      %v490 = vld [vmem:[%s3 + $0x40] sm:$0xff]
      %v491 = vld [vmem:[%s3 + $0x48] sm:$0xff]
      %v492 = vld [vmem:[%s3 + $0x50] sm:$0xff]
      %v493 = vld [vmem:[%s3 + $0x58] sm:$0xff]
      %v494 = vld [vmem:[%s3 + $0x60] sm:$0xff]
      %v495 = vld [vmem:[%s3 + $0x68] sm:$0xff]
      %v496 = vld [vmem:[%s3 + $0x70] sm:$0xff]
      %v497 = vld [vmem:[%s3 + $0x78] sm:$0xff]
      %v498 = vld [vmem:[%s4] sm:$0x1]
      %v500 = vlaneseq
      %v501 = vshrl.u32 %v500, 7
      %v502 = vsub.s32 0, %v501
      %v503 = vrot.slane %v498, %v502
      %505 = vmatprep.subr.mxu0 0.0
      %506 = vmatpush1.msra.mxu0 %v482
      %507 = vmatprep.subr.mxu0 0.0
      %508 = vmatpush1.msra.mxu0 %v483
      %509 = vmatprep.subr.mxu0 0.0
      %510 = vmatpush1.msra.mxu0 %v484
      %511 = vmatprep.subr.mxu0 0.0
      %512 = vmatpush1.msra.mxu0 %v485
      %513 = vmatprep.subr.mxu0 0.0
      %514 = vmatpush1.msra.mxu0 %v486
      %515 = vmatprep.subr.mxu0 0.0
      %516 = vmatpush1.msra.mxu0 %v487
      %517 = vmatprep.subr.mxu0 0.0
      %518 = vmatpush1.msra.mxu0 %v488
      %519 = vmatprep.subr.mxu0 0.0
      %520 = vmatpush1.msra.mxu0 %v489
      %521 = vmatprep.subr.mxu0 0.0
      %522 = vmatpush1.msra.mxu0 %v490
      %523 = vmatprep.subr.mxu0 0.0
      %524 = vmatpush1.msra.mxu0 %v491
      %525 = vmatprep.subr.mxu0 0.0
      %526 = vmatpush1.msra.mxu0 %v492
      %527 = vmatprep.subr.mxu0 0.0
      %528 = vmatpush1.msra.mxu0 %v493
      %529 = vmatprep.subr.mxu0 0.0
      %530 = vmatpush1.msra.mxu0 %v494
      %531 = vmatprep.subr.mxu0 0.0
      %532 = vmatpush1.msra.mxu0 %v495
      %533 = vmatprep.subr.mxu0 0.0
      %534 = vmatpush1.msra.mxu0 %v496
      %535 = vmatprep.subr.mxu0 0.0
      %536 = vmatpush1.msra.mxu0 %v497
      %537 = vmatprep.subr.mxu0 0.0
      %538 = vmatpush1.msra.mxu0 0.0
      %539 = vmatprep.subr.mxu0 0.0
      %540 = vmatpush1.msra.mxu0 0.0
      %541 = vmatprep.subr.mxu0 0.0
      %542 = vmatpush1.msra.mxu0 0.0
      %543 = vmatprep.subr.mxu0 0.0
      %544 = vmatpush1.msra.mxu0 0.0
      %545 = vmatprep.subr.mxu0 0.0
      %546 = vmatpush1.msra.mxu0 0.0
      %547 = vmatprep.subr.mxu0 0.0
      %548 = vmatpush1.msra.mxu0 0.0
      %549 = vmatprep.subr.mxu0 0.0
      %550 = vmatpush1.msra.mxu0 0.0
      %551 = vmatprep.subr.mxu0 0.0
      %552 = vmatpush1.msra.mxu0 0.0
      %553 = vmatprep.subr.mxu0 0.0
      %554 = vmatpush1.msra.mxu0 0.0
      %555 = vmatprep.subr.mxu0 0.0
      %556 = vmatpush1.msra.mxu0 0.0
      %557 = vmatprep.subr.mxu0 0.0
      %558 = vmatpush1.msra.mxu0 0.0
      %559 = vmatprep.subr.mxu0 0.0
      %560 = vmatpush1.msra.mxu0 0.0
      %561 = vmatprep.subr.mxu0 0.0
      %562 = vmatpush1.msra.mxu0 0.0
      %563 = vmatprep.subr.mxu0 0.0
      %564 = vmatpush1.msra.mxu0 0.0
      %565 = vmatprep.subr.mxu0 0.0
      %566 = vmatpush1.msra.mxu0 0.0
      %567 = vmatprep.subr.mxu0 0.0
      %568 = vmatpush1.msra.mxu0 0.0
      %569 = vmatprep.mubr.f32.mxu0 0.0
      %570 = vmatmul.mubr.f32.gmra.mrb[0].mxu0 %v466
      %v571 = vpop.f32.mrb[0].mxu0
      %v572 = vadd.f32 %v503, %v571
      %v573 = vpop.f32.mrb[0].mxu0
      %574 = vmatprep.mubr.f32.mxu0 0.0
      %575 = vmatmul.mubr.f32.gmra.mrb[0].mxu0 %v467
      %v576 = vpop.f32.mrb[0].mxu0
      %v577 = vadd.f32 %v503, %v576
      %v578 = vpop.f32.mrb[0].mxu0
      %579 = vmatprep.mubr.f32.mxu0 0.0
      %580 = vmatmul.mubr.f32.gmra.mrb[0].mxu0 %v468
      %v581 = vpop.f32.mrb[0].mxu0
      %v582 = vadd.f32 %v503, %v581
      %v583 = vpop.f32.mrb[0].mxu0
      %584 = vmatprep.mubr.f32.mxu0 0.0
      %585 = vmatmul.mubr.f32.gmra.mrb[0].mxu0 %v469
      %v586 = vpop.f32.mrb[0].mxu0
      %v587 = vadd.f32 %v503, %v586
      %v588 = vpop.f32.mrb[0].mxu0
      %589 = vmatprep.mubr.f32.mxu0 0.0
      %590 = vmatmul.mubr.f32.gmra.mrb[0].mxu0 %v470
      %v591 = vpop.f32.mrb[0].mxu0
      %v592 = vadd.f32 %v503, %v591
      %v593 = vpop.f32.mrb[0].mxu0
      %594 = vmatprep.mubr.f32.mxu0 0.0
      %595 = vmatmul.mubr.f32.gmra.mrb[0].mxu0 %v471
      %v596 = vpop.f32.mrb[0].mxu0
      %v597 = vadd.f32 %v503, %v596
      %v598 = vpop.f32.mrb[0].mxu0
      %599 = vmatprep.mubr.f32.mxu0 0.0
      %600 = vmatmul.mubr.f32.gmra.mrb[0].mxu0 %v472
      %v601 = vpop.f32.mrb[0].mxu0
      %v602 = vadd.f32 %v503, %v601
      %v603 = vpop.f32.mrb[0].mxu0
      %604 = vmatprep.mubr.f32.mxu0 0.0
      %605 = vmatmul.mubr.f32.gmra.mrb[0].mxu0 %v473
      %v606 = vpop.f32.mrb[0].mxu0
      %v607 = vadd.f32 %v503, %v606
      %v608 = vpop.f32.mrb[0].mxu0
      %609 = vmatprep.mubr.f32.mxu0 0.0
      %610 = vmatmul.mubr.f32.gmra.mrb[0].mxu0 %v474
      %v611 = vpop.f32.mrb[0].mxu0
      %v612 = vadd.f32 %v503, %v611
      %v613 = vpop.f32.mrb[0].mxu0
      %614 = vmatprep.mubr.f32.mxu0 0.0
      %615 = vmatmul.mubr.f32.gmra.mrb[0].mxu0 %v475
      %v616 = vpop.f32.mrb[0].mxu0
      %v617 = vadd.f32 %v503, %v616
      %v618 = vpop.f32.mrb[0].mxu0
      %619 = vmatprep.mubr.f32.mxu0 0.0
      %620 = vmatmul.mubr.f32.gmra.mrb[0].mxu0 %v476
      %v621 = vpop.f32.mrb[0].mxu0
      %v622 = vadd.f32 %v503, %v621
      %v623 = vpop.f32.mrb[0].mxu0
      %624 = vmatprep.mubr.f32.mxu0 0.0
      %625 = vmatmul.mubr.f32.gmra.mrb[0].mxu0 %v477
      %v626 = vpop.f32.mrb[0].mxu0
      %v627 = vadd.f32 %v503, %v626
      %v628 = vpop.f32.mrb[0].mxu0
      %629 = vmatprep.mubr.f32.mxu0 0.0
      %630 = vmatmul.mubr.f32.gmra.mrb[0].mxu0 %v478
      %v631 = vpop.f32.mrb[0].mxu0
      %v632 = vadd.f32 %v503, %v631
      %v633 = vpop.f32.mrb[0].mxu0
      %634 = vmatprep.mubr.f32.mxu0 0.0
      %635 = vmatmul.mubr.f32.gmra.mrb[0].mxu0 %v479
      %v636 = vpop.f32.mrb[0].mxu0
      %v637 = vadd.f32 %v503, %v636
      %v638 = vpop.f32.mrb[0].mxu0
      %639 = vmatprep.mubr.f32.mxu0 0.0
      %640 = vmatmul.mubr.f32.gmra.mrb[0].mxu0 %v480
      %v641 = vpop.f32.mrb[0].mxu0
      %v642 = vadd.f32 %v503, %v641
      %v643 = vpop.f32.mrb[0].mxu0
      %644 = vmatprep.mubr.f32.mxu0 0.0
      %645 = vmatmul.mubr.f32.gmra.mrb[0].mxu0 %v481
      %v646 = vpop.f32.mrb[0].mxu0
      %v647 = vadd.f32 %v503, %v646
      %v648 = vpop.f32.mrb[0].mxu0
      %649 = vdwg.mxu0
      %v650 = vtanh.pop %v572
      %v651 = vtanh.pop %v577
      %v652 = vtanh.pop %v582
      %v653 = vtanh.pop %v587
      %v654 = vtanh.pop %v592
      %v655 = vtanh.pop %v597
      %v656 = vtanh.pop %v602
      %v657 = vtanh.pop %v607
      %v658 = vtanh.pop %v612
      %v659 = vtanh.pop %v617
      %v660 = vtanh.pop %v622
      %v661 = vtanh.pop %v627
      %v662 = vtanh.pop %v632
      %v663 = vtanh.pop %v637
      %v664 = vtanh.pop %v642
      %v665 = vtanh.pop %v647
      %v666 = vld [vmem:[%s5] sm:$0xff]
      %v667 = vld [vmem:[%s5 + $0x8] sm:$0xff]
      %v668 = vld [vmem:[%s5 + $0x10] sm:$0xff]
      %v669 = vld [vmem:[%s5 + $0x18] sm:$0xff]
      %v670 = vld [vmem:[%s5 + $0x20] sm:$0xff]
      %v671 = vld [vmem:[%s5 + $0x28] sm:$0xff]
      %v672 = vld [vmem:[%s5 + $0x30] sm:$0xff]
      %v673 = vld [vmem:[%s5 + $0x38] sm:$0xff]
      %v674 = vld [vmem:[%s5 + $0x40] sm:$0xff]
      %v675 = vld [vmem:[%s5 + $0x48] sm:$0xff]
      %v676 = vld [vmem:[%s5 + $0x50] sm:$0xff]
      %v677 = vld [vmem:[%s5 + $0x58] sm:$0xff]
      %v678 = vld [vmem:[%s5 + $0x60] sm:$0xff]
      %v679 = vld [vmem:[%s5 + $0x68] sm:$0xff]
      %v680 = vld [vmem:[%s5 + $0x70] sm:$0xff]
      %v681 = vld [vmem:[%s5 + $0x78] sm:$0xff]
      %v682 = vld [vmem:[%s6] sm:$0x1]
      %v684 = vlaneseq
      %v685 = vshrl.u32 %v684, 7
      %v686 = vsub.s32 0, %v685
      %v687 = vrot.slane %v682, %v686
      %689 = vmatprep.subr.mxu0 0.0
      %690 = vmatpush1.msra.mxu0 %v666
      %691 = vmatprep.subr.mxu0 0.0
      %692 = vmatpush1.msra.mxu0 %v667
      %693 = vmatprep.subr.mxu0 0.0
      %694 = vmatpush1.msra.mxu0 %v668
      %695 = vmatprep.subr.mxu0 0.0
      %696 = vmatpush1.msra.mxu0 %v669
      %697 = vmatprep.subr.mxu0 0.0
      %698 = vmatpush1.msra.mxu0 %v670
      %699 = vmatprep.subr.mxu0 0.0
      %700 = vmatpush1.msra.mxu0 %v671
      %701 = vmatprep.subr.mxu0 0.0
      %702 = vmatpush1.msra.mxu0 %v672
      %703 = vmatprep.subr.mxu0 0.0
      %704 = vmatpush1.msra.mxu0 %v673
      %705 = vmatprep.subr.mxu0 0.0
      %706 = vmatpush1.msra.mxu0 %v674
      %707 = vmatprep.subr.mxu0 0.0
      %708 = vmatpush1.msra.mxu0 %v675
      %709 = vmatprep.subr.mxu0 0.0
      %710 = vmatpush1.msra.mxu0 %v676
      %711 = vmatprep.subr.mxu0 0.0
      %712 = vmatpush1.msra.mxu0 %v677
      %713 = vmatprep.subr.mxu0 0.0
      %714 = vmatpush1.msra.mxu0 %v678
      %715 = vmatprep.subr.mxu0 0.0
      %716 = vmatpush1.msra.mxu0 %v679
      %717 = vmatprep.subr.mxu0 0.0
      %718 = vmatpush1.msra.mxu0 %v680
      %719 = vmatprep.subr.mxu0 0.0
      %720 = vmatpush1.msra.mxu0 %v681
      %721 = vmatprep.subr.mxu0 0.0
      %722 = vmatpush1.msra.mxu0 0.0
      %723 = vmatprep.subr.mxu0 0.0
      %724 = vmatpush1.msra.mxu0 0.0
      %725 = vmatprep.subr.mxu0 0.0
      %726 = vmatpush1.msra.mxu0 0.0
      %727 = vmatprep.subr.mxu0 0.0
      %728 = vmatpush1.msra.mxu0 0.0
      %729 = vmatprep.subr.mxu0 0.0
      %730 = vmatpush1.msra.mxu0 0.0
      %731 = vmatprep.subr.mxu0 0.0
      %732 = vmatpush1.msra.mxu0 0.0
      %733 = vmatprep.subr.mxu0 0.0
      %734 = vmatpush1.msra.mxu0 0.0
      %735 = vmatprep.subr.mxu0 0.0
      %736 = vmatpush1.msra.mxu0 0.0
      %737 = vmatprep.subr.mxu0 0.0
      %738 = vmatpush1.msra.mxu0 0.0
      %739 = vmatprep.subr.mxu0 0.0
      %740 = vmatpush1.msra.mxu0 0.0
      %741 = vmatprep.subr.mxu0 0.0
      %742 = vmatpush1.msra.mxu0 0.0
      %743 = vmatprep.subr.mxu0 0.0
      %744 = vmatpush1.msra.mxu0 0.0
      %745 = vmatprep.subr.mxu0 0.0
      %746 = vmatpush1.msra.mxu0 0.0
      %747 = vmatprep.subr.mxu0 0.0
      %748 = vmatpush1.msra.mxu0 0.0
      %749 = vmatprep.subr.mxu0 0.0
      %750 = vmatpush1.msra.mxu0 0.0
      %751 = vmatprep.subr.mxu0 0.0
      %752 = vmatpush1.msra.mxu0 0.0
      %753 = vmatprep.mubr.f32.mxu0 0.0
      %754 = vmatmul.mubr.f32.gmra.mrb[0].mxu0 %v650
      %v755 = vpop.f32.mrb[0].mxu0
      %v756 = vadd.f32 %v687, %v755
      %v757 = vpop.f32.mrb[0].mxu0
      %758 = vmatprep.mubr.f32.mxu0 0.0
      %759 = vmatmul.mubr.f32.gmra.mrb[0].mxu0 %v651
      %v760 = vpop.f32.mrb[0].mxu0
      %v761 = vadd.f32 %v687, %v760
      %v762 = vpop.f32.mrb[0].mxu0
      %763 = vmatprep.mubr.f32.mxu0 0.0
      %764 = vmatmul.mubr.f32.gmra.mrb[0].mxu0 %v652
      %v765 = vpop.f32.mrb[0].mxu0
      %v766 = vadd.f32 %v687, %v765
      %v767 = vpop.f32.mrb[0].mxu0
      %768 = vmatprep.mubr.f32.mxu0 0.0
      %769 = vmatmul.mubr.f32.gmra.mrb[0].mxu0 %v653
      %v770 = vpop.f32.mrb[0].mxu0
      %v771 = vadd.f32 %v687, %v770
      %v772 = vpop.f32.mrb[0].mxu0
      %773 = vmatprep.mubr.f32.mxu0 0.0
      %774 = vmatmul.mubr.f32.gmra.mrb[0].mxu0 %v654
      %v775 = vpop.f32.mrb[0].mxu0
      %v776 = vadd.f32 %v687, %v775
      %v777 = vpop.f32.mrb[0].mxu0
      %778 = vmatprep.mubr.f32.mxu0 0.0
      %779 = vmatmul.mubr.f32.gmra.mrb[0].mxu0 %v655
      %v780 = vpop.f32.mrb[0].mxu0
      %v781 = vadd.f32 %v687, %v780
      %v782 = vpop.f32.mrb[0].mxu0
      %783 = vmatprep.mubr.f32.mxu0 0.0
      %784 = vmatmul.mubr.f32.gmra.mrb[0].mxu0 %v656
      %v785 = vpop.f32.mrb[0].mxu0
      %v786 = vadd.f32 %v687, %v785
      %v787 = vpop.f32.mrb[0].mxu0
      %788 = vmatprep.mubr.f32.mxu0 0.0
      %789 = vmatmul.mubr.f32.gmra.mrb[0].mxu0 %v657
      %v790 = vpop.f32.mrb[0].mxu0
      %v791 = vadd.f32 %v687, %v790
      %v792 = vpop.f32.mrb[0].mxu0
      %793 = vmatprep.mubr.f32.mxu0 0.0
      %794 = vmatmul.mubr.f32.gmra.mrb[0].mxu0 %v658
      %v795 = vpop.f32.mrb[0].mxu0
      %v796 = vadd.f32 %v687, %v795
      %v797 = vpop.f32.mrb[0].mxu0
      %798 = vmatprep.mubr.f32.mxu0 0.0
      %799 = vmatmul.mubr.f32.gmra.mrb[0].mxu0 %v659
      %v800 = vpop.f32.mrb[0].mxu0
      %v801 = vadd.f32 %v687, %v800
      %v802 = vpop.f32.mrb[0].mxu0
      %803 = vmatprep.mubr.f32.mxu0 0.0
      %804 = vmatmul.mubr.f32.gmra.mrb[0].mxu0 %v660
      %v805 = vpop.f32.mrb[0].mxu0
      %v806 = vadd.f32 %v687, %v805
      %v807 = vpop.f32.mrb[0].mxu0
      %808 = vmatprep.mubr.f32.mxu0 0.0
      %809 = vmatmul.mubr.f32.gmra.mrb[0].mxu0 %v661
      %v810 = vpop.f32.mrb[0].mxu0
      %v811 = vadd.f32 %v687, %v810
      %v812 = vpop.f32.mrb[0].mxu0
      %813 = vmatprep.mubr.f32.mxu0 0.0
      %814 = vmatmul.mubr.f32.gmra.mrb[0].mxu0 %v662
      %v815 = vpop.f32.mrb[0].mxu0
      %v816 = vadd.f32 %v687, %v815
      %v817 = vpop.f32.mrb[0].mxu0
      %818 = vmatprep.mubr.f32.mxu0 0.0
      %819 = vmatmul.mubr.f32.gmra.mrb[0].mxu0 %v663
      %v820 = vpop.f32.mrb[0].mxu0
      %v821 = vadd.f32 %v687, %v820
      %v822 = vpop.f32.mrb[0].mxu0
      %823 = vmatprep.mubr.f32.mxu0 0.0
      %824 = vmatmul.mubr.f32.gmra.mrb[0].mxu0 %v664
      %v825 = vpop.f32.mrb[0].mxu0
      %v826 = vadd.f32 %v687, %v825
      %v827 = vpop.f32.mrb[0].mxu0
      %828 = vmatprep.mubr.f32.mxu0 0.0
      %829 = vmatmul.mubr.f32.gmra.mrb[0].mxu0 %v665
      %v830 = vpop.f32.mrb[0].mxu0
      %v831 = vadd.f32 %v687, %v830
      %v832 = vpop.f32.mrb[0].mxu0
      %833 = vdwg.mxu0
      %v834 = vlaneseq
      %v835 = vand.u32 %v834, 127
      %vm836 = vcmp.lt.s32.totalorder %v835, 4
      %v837 = vsel %vm836, %v756, -inf
      %v838 = vsel %vm836, %v761, -inf
      %v839 = vsel %vm836, %v766, -inf
      %v840 = vsel %vm836, %v771, -inf
      %v841 = vsel %vm836, %v776, -inf
      %v842 = vsel %vm836, %v781, -inf
      %v843 = vsel %vm836, %v786, -inf
      %v844 = vsel %vm836, %v791, -inf
      %v845 = vsel %vm836, %v796, -inf
      %v846 = vsel %vm836, %v801, -inf
      %v847 = vsel %vm836, %v806, -inf
      %v848 = vsel %vm836, %v811, -inf
      %v849 = vsel %vm836, %v816, -inf
      %v850 = vsel %vm836, %v821, -inf
      %v851 = vsel %vm836, %v826, -inf
      %v852 = vsel %vm836, %v831, -inf
      %853 = vmax.xlane.f32.xlu0 %v837
      %v854 = vpop.xlane.xlu0 %853
      %855 = vmax.xlane.f32.xlu0 %v838
      %v856 = vpop.xlane.xlu0 %855
      %857 = vmax.xlane.f32.xlu0 %v839
      %v858 = vpop.xlane.xlu0 %857
      %859 = vmax.xlane.f32.xlu0 %v840
      %v860 = vpop.xlane.xlu0 %859
      %861 = vmax.xlane.f32.xlu0 %v841
      %v862 = vpop.xlane.xlu0 %861
      %863 = vmax.xlane.f32.xlu0 %v842
      %v864 = vpop.xlane.xlu0 %863
      %865 = vmax.xlane.f32.xlu0 %v843
      %v866 = vpop.xlane.xlu0 %865
      %867 = vmax.xlane.f32.xlu0 %v844
      %v868 = vpop.xlane.xlu0 %867
      %869 = vmax.xlane.f32.xlu0 %v845
      %v870 = vpop.xlane.xlu0 %869
      %871 = vmax.xlane.f32.xlu0 %v846
      %v872 = vpop.xlane.xlu0 %871
      %873 = vmax.xlane.f32.xlu0 %v847
      %v874 = vpop.xlane.xlu0 %873
      %875 = vmax.xlane.f32.xlu0 %v848
      %v876 = vpop.xlane.xlu0 %875
      %877 = vmax.xlane.f32.xlu0 %v849
      %v878 = vpop.xlane.xlu0 %877
      %879 = vmax.xlane.f32.xlu0 %v850
      %v880 = vpop.xlane.xlu0 %879
      %881 = vmax.xlane.f32.xlu0 %v851
      %v882 = vpop.xlane.xlu0 %881
      %883 = vmax.xlane.f32.xlu0 %v852
      %v884 = vpop.xlane.xlu0 %883
      %v885 = vsub.f32 %v837, %v854
      %v886 = vsub.f32 %v838, %v856
      %v887 = vsub.f32 %v839, %v858
      %v888 = vsub.f32 %v840, %v860
      %v889 = vsub.f32 %v841, %v862
      %v890 = vsub.f32 %v842, %v864
      %v891 = vsub.f32 %v843, %v866
      %v892 = vsub.f32 %v844, %v868
      %v893 = vsub.f32 %v845, %v870
      %v894 = vsub.f32 %v846, %v872
      %v895 = vsub.f32 %v847, %v874
      %v896 = vsub.f32 %v848, %v876
      %v897 = vsub.f32 %v849, %v878
      %v898 = vsub.f32 %v850, %v880
      %v899 = vsub.f32 %v851, %v882
      %v900 = vsub.f32 %v852, %v884
      %v901 = vmul.f32 %v885, 1.442695
      %v902 = vpow.pop %v901
      %v903 = vmul.f32 %v886, 1.442695
      %v904 = vpow.pop %v903
      %v905 = vmul.f32 %v887, 1.442695
      %v906 = vpow.pop %v905
      %v907 = vmul.f32 %v888, 1.442695
      %v908 = vpow.pop %v907
      %v909 = vmul.f32 %v889, 1.442695
      %v910 = vpow.pop %v909
      %v911 = vmul.f32 %v890, 1.442695
      %v912 = vpow.pop %v911
      %v913 = vmul.f32 %v891, 1.442695
      %v914 = vpow.pop %v913
      %v915 = vmul.f32 %v892, 1.442695
      %v916 = vpow.pop %v915
      %v917 = vmul.f32 %v893, 1.442695
      %v918 = vpow.pop %v917
      %v919 = vmul.f32 %v894, 1.442695
      %v920 = vpow.pop %v919
      %v921 = vmul.f32 %v895, 1.442695
      %v922 = vpow.pop %v921
      %v923 = vmul.f32 %v896, 1.442695
      %v924 = vpow.pop %v923
      %v925 = vmul.f32 %v897, 1.442695
      %v926 = vpow.pop %v925
      %v927 = vmul.f32 %v898, 1.442695
      %v928 = vpow.pop %v927
      %v929 = vmul.f32 %v899, 1.442695
      %v930 = vpow.pop %v929
      %v931 = vmul.f32 %v900, 1.442695
      %v932 = vpow.pop %v931
      %v933 = vsel %vm836, %v902, 0.0
      %v934 = vsel %vm836, %v904, 0.0
      %v935 = vsel %vm836, %v906, 0.0
      %v936 = vsel %vm836, %v908, 0.0
      %v937 = vsel %vm836, %v910, 0.0
      %v938 = vsel %vm836, %v912, 0.0
      %v939 = vsel %vm836, %v914, 0.0
      %v940 = vsel %vm836, %v916, 0.0
      %v941 = vsel %vm836, %v918, 0.0
      %v942 = vsel %vm836, %v920, 0.0
      %v943 = vsel %vm836, %v922, 0.0
      %v944 = vsel %vm836, %v924, 0.0
      %v945 = vsel %vm836, %v926, 0.0
      %v946 = vsel %vm836, %v928, 0.0
      %v947 = vsel %vm836, %v930, 0.0
      %v948 = vsel %vm836, %v932, 0.0
      %949 = vadd.xlane.f32.xlu0 %v933
      %v950 = vpop.xlane.xlu0 %949
      %951 = vadd.xlane.f32.xlu0 %v934
      %v952 = vpop.xlane.xlu0 %951
      %953 = vadd.xlane.f32.xlu0 %v935
      %v954 = vpop.xlane.xlu0 %953
      %955 = vadd.xlane.f32.xlu0 %v936
      %v956 = vpop.xlane.xlu0 %955
      %957 = vadd.xlane.f32.xlu0 %v937
      %v958 = vpop.xlane.xlu0 %957
      %959 = vadd.xlane.f32.xlu0 %v938
      %v960 = vpop.xlane.xlu0 %959
      %961 = vadd.xlane.f32.xlu0 %v939
      %v962 = vpop.xlane.xlu0 %961
      %963 = vadd.xlane.f32.xlu0 %v940
      %v964 = vpop.xlane.xlu0 %963
      %965 = vadd.xlane.f32.xlu0 %v941
      %v966 = vpop.xlane.xlu0 %965
      %967 = vadd.xlane.f32.xlu0 %v942
      %v968 = vpop.xlane.xlu0 %967
      %969 = vadd.xlane.f32.xlu0 %v943
      %v970 = vpop.xlane.xlu0 %969
      %971 = vadd.xlane.f32.xlu0 %v944
      %v972 = vpop.xlane.xlu0 %971
      %973 = vadd.xlane.f32.xlu0 %v945
      %v974 = vpop.xlane.xlu0 %973
      %975 = vadd.xlane.f32.xlu0 %v946
      %v976 = vpop.xlane.xlu0 %975
      %977 = vadd.xlane.f32.xlu0 %v947
      %v978 = vpop.xlane.xlu0 %977
      %979 = vadd.xlane.f32.xlu0 %v948
      %v980 = vpop.xlane.xlu0 %979
      %v981 = vrcp.pop %v950
      %v982 = vrcp.pop %v952
      %v983 = vrcp.pop %v954
      %v984 = vrcp.pop %v956
      %v985 = vrcp.pop %v958
      %v986 = vrcp.pop %v960
      %v987 = vrcp.pop %v962
      %v988 = vrcp.pop %v964
      %v989 = vrcp.pop %v966
      %v990 = vrcp.pop %v968
      %v991 = vrcp.pop %v970
      %v992 = vrcp.pop %v972
      %v993 = vrcp.pop %v974
      %v994 = vrcp.pop %v976
      %v995 = vrcp.pop %v978
      %v996 = vrcp.pop %v980
      %v997 = vmul.f32 %v933, %v981
      %v998 = vmul.f32 %v934, %v982
      %v999 = vmul.f32 %v935, %v983
      %v1000 = vmul.f32 %v936, %v984
      %v1001 = vmul.f32 %v937, %v985
      %v1002 = vmul.f32 %v938, %v986
      %v1003 = vmul.f32 %v939, %v987
      %v1004 = vmul.f32 %v940, %v988
      %v1005 = vmul.f32 %v941, %v989
      %v1006 = vmul.f32 %v942, %v990
      %v1007 = vmul.f32 %v943, %v991
      %v1008 = vmul.f32 %v944, %v992
      %v1009 = vmul.f32 %v945, %v993
      %v1010 = vmul.f32 %v946, %v994
      %v1011 = vmul.f32 %v947, %v995
      %v1012 = vmul.f32 %v948, %v996
      %v1013 = vsel %vm836, %v997, %v756
      %v1014 = vsel %vm836, %v998, %v761
      %v1015 = vsel %vm836, %v999, %v766
      %v1016 = vsel %vm836, %v1000, %v771
      %v1017 = vsel %vm836, %v1001, %v776
      %v1018 = vsel %vm836, %v1002, %v781
      %v1019 = vsel %vm836, %v1003, %v786
      %v1020 = vsel %vm836, %v1004, %v791
      %v1021 = vsel %vm836, %v1005, %v796
      %v1022 = vsel %vm836, %v1006, %v801
      %v1023 = vsel %vm836, %v1007, %v806
      %v1024 = vsel %vm836, %v1008, %v811
      %v1025 = vsel %vm836, %v1009, %v816
      %v1026 = vsel %vm836, %v1010, %v821
      %v1027 = vsel %vm836, %v1011, %v826
      %v1028 = vsel %vm836, %v1012, %v831
      %1029 = vst [vmem:[%s280] sm:$0xff] %v1013
      %1030 = vst [vmem:[%s280 + $0x8] sm:$0xff] %v1014
      %1031 = vst [vmem:[%s280 + $0x10] sm:$0xff] %v1015
      %1032 = vst [vmem:[%s280 + $0x18] sm:$0xff] %v1016
      %1033 = vst [vmem:[%s280 + $0x20] sm:$0xff] %v1017
      %1034 = vst [vmem:[%s280 + $0x28] sm:$0xff] %v1018
      %1035 = vst [vmem:[%s280 + $0x30] sm:$0xff] %v1019
      %1036 = vst [vmem:[%s280 + $0x38] sm:$0xff] %v1020
      %1037 = vst [vmem:[%s280 + $0x40] sm:$0xff] %v1021
      %1038 = vst [vmem:[%s280 + $0x48] sm:$0xff] %v1022
      %1039 = vst [vmem:[%s280 + $0x50] sm:$0xff] %v1023
      %1040 = vst [vmem:[%s280 + $0x58] sm:$0xff] %v1024
      %1041 = vst [vmem:[%s280 + $0x60] sm:$0xff] %v1025
      %1042 = vst [vmem:[%s280 + $0x68] sm:$0xff] %v1026
      %1043 = vst [vmem:[%s280 + $0x70] sm:$0xff] %v1027
      %1044 = vst [vmem:[%s280 + $0x78] sm:$0xff] %v1028
      %s1045 = smul.u32 16, %s18
      %p1046 = scmp.lt.s32.totalorder %s1045, 31
      %s1047 = scalar_select %p1046, %s1045, 31
      %s1048 = smul.addr %s1047, 8
      %s1049 = scalar_lea.vmem %s7, %s1048
      // Predicated region
      $region49: #{_ppo_forward_impl.1} parent=47 // pred_check
        %p1050 = pneg %p188
      $region50: #{_ppo_forward_impl.1} parent=47 // pred_check_branch
        %1052 = sbr.rel (%p1050) target = $region52
      $region51: #{_ppo_forward_impl.1} parent=47 // pred_region
        %s1053 = smul.u32 16, %s18
      $region52: #{_ppo_forward_impl.1} parent=47 // pred_fallthru
        _
    $region48: #{_ppo_forward_impl.1} parent=5 // pred_fallthru
      _
    %p1054 = scmp.le.s32.totalorder 2, %s13
    // Predicated region
    $region53: #{_ppo_forward_impl.1} parent=5 // pred_check
      %p1055 = pneg %p1054
    $region54: #{_ppo_forward_impl.1} parent=5 // pred_check_branch
      %1057 = sbr.rel (%p1055) target = $region56
    $region55: #{_ppo_forward_impl.1} parent=5 // pred_region
      %s1058 = ssub.s32 %s13, 2
      // Predicated region
      $region57: #{_ppo_forward_impl.1} parent=55 // pred_check
        %p1059 = pneg %p194
      $region58: #{_ppo_forward_impl.1} parent=55 // pred_check_branch
        %1061 = sbr.rel (%p1059) target = $region60
      $region59: #{_ppo_forward_impl.1} parent=55 // pred_region
        %s1062 = smul.u32 16, %s19
        %p1063 = scmp.lt.s32.totalorder %s1062, 31
        %s1064 = scalar_select %p1063, %s1062, 31
        %s1065 = smul.addr %s1064, 8
        %s1066 = scalar_lea.vmem %s7, %s1065
      $region60: #{_ppo_forward_impl.1} parent=55 // pred_fallthru
        _
    $region56: #{_ppo_forward_impl.1} parent=5 // pred_fallthru
      _
  $region6: #{_ppo_forward_impl.1} parent=0 // loop_footer
    %s17 = sadd.s32 1, %s13
  $region7: #{_ppo_forward_impl.1} parent=0 // loop_footer_branch
    %12 = sbr.rel target = $region3
  $region8: #{_ppo_forward_impl.1} parent=0 // loop_exit
    _

</llo_original>
